<compile_context>
chip_gen: v5e
topology: v5e:2x2
jax: 0.10.0
libtpu: 0.0.40
codegen_flags: <defaults>
</compile_context>

<pallas_src>
import functools

import jax
import jax.numpy as jnp
from jax.experimental import pallas as pl
from jax.experimental.pallas import tpu as pltpu

MIN_NORM = 1e-15
ARTANH_EPS = 1e-15
PROJ_EPS = 4e-3          # PoincareBall.eps[torch.float32]

_LANES = 128
_SUBLANES = 8


def _hypact_kernel(*refs, c_in: float, c_out: float, packed: bool):
    if packed:
        m_ref, x_ref, o_ref = refs
    else:
        x_ref, o_ref = refs

    x = x_ref[...].astype(jnp.float32)          # (T, L) lane-dense block

    sqrt_cin = float(c_in) ** 0.5
    sqrt_cout = float(c_out) ** 0.5
    inv_sqrt_cin = 1.0 / sqrt_cin
    inv_sqrt_cout = 1.0 / sqrt_cout

    if packed:
        m = m_ref[...]                          # (L, L) block-diagonal 0/1 matrix

        def rowsum(v):
            # Per-logical-row sum, already broadcast across each row's 32-lane group.
            # Runs on the (otherwise idle) MXU; HIGHEST keeps full f32 precision.
            return jnp.dot(v, m, preferred_element_type=jnp.float32,
                           precision=jax.lax.Precision.HIGHEST)
    else:
        def rowsum(v):
            return jnp.sum(v, axis=-1, keepdims=True)

    # ---- logmap0(x, c_in) ----
    sq_x = jnp.maximum(rowsum(x * x), MIN_NORM * MIN_NORM)
    inv_nx = jax.lax.rsqrt(sq_x)                # ~ 1/||x|| (clamped)
    nx = sq_x * inv_nx                          # ~ ||x||
    z = jnp.clip(sqrt_cin * nx, -1.0 + ARTANH_EPS, 1.0 - ARTANH_EPS)
    artanh = 0.5 * jnp.log((1.0 + z) / (1.0 - z))
    scale_log = artanh * inv_nx * inv_sqrt_cin

    # ---- act = ReLU; proj_tan0 is identity for the Poincare ball ----
    xt = jnp.maximum(scale_log * x, 0.0)

    # ---- expmap0(xt, c_out) fused with proj(., c_out) ----
    sq_u = jnp.maximum(rowsum(xt * xt), MIN_NORM * MIN_NORM)
    inv_nu = jax.lax.rsqrt(sq_u)                # ~ 1/||xt||
    nu = sq_u * inv_nu                          # ~ ||xt||
    t = jnp.tanh(sqrt_cout * nu)
    # expmap0 scale        : t * inv_nu / sqrt_cout
    # analytic ||gamma||   : t / sqrt_cout ;  maxnorm = (1 - eps) / sqrt_cout
    # proj extra factor    : min(1, maxnorm/||gamma||) = min(1, (1 - eps)/t)
    # combined final scale : min(t, 1 - eps) * inv_nu / sqrt_cout
    scale_out = jnp.minimum(t, 1.0 - PROJ_EPS) * (inv_nu * inv_sqrt_cout)

    o_ref[...] = (scale_out * xt).astype(o_ref.dtype)


def hyp_act(x: jax.Array, c_in: float, c_out: float, *,
            max_block_rows: int = 2048,
            target_block_bytes: int = 2 * 1024 * 1024) -> jax.Array:
    """HypAct forward for x of shape (N, D)."""
    n, d = x.shape
    orig_dtype = x.dtype

    # Lane-dense packing: fold `pack` logical rows into one 128-wide packed row.
    pack = _LANES // d if (d < _LANES and _LANES % d == 0) else 1
    lanes = pack * d

    # Packed-row block size: as large as comfortably double-buffers in VMEM
    # (in + out, 2 buffers each) on all of v5e / v6e / v7x.
    bytes_per_packed_row = lanes * 4
    tile_p = (target_block_bytes // max(bytes_per_packed_row, 1)) // _SUBLANES * _SUBLANES
    tile_p = max(_SUBLANES, min(max_block_rows, tile_p))

    p = pl.cdiv(n, pack)                                  # packed rows needed
    tile_p = min(tile_p, max(_SUBLANES, pl.cdiv(p, _SUBLANES) * _SUBLANES))
    p_pad = pl.cdiv(p, tile_p) * tile_p                   # pad so the grid divides evenly

    if p_pad * pack != n:
        x = jnp.pad(x, ((0, p_pad * pack - n), (0, 0)))   # zero rows are numerically safe
    xp = x.reshape(p_pad, lanes)                          # contiguous -> metadata-only

    kernel = functools.partial(_hypact_kernel, c_in=float(c_in), c_out=float(c_out),
                               packed=pack > 1)

    in_specs = [pl.BlockSpec((tile_p, lanes), lambda i: (i, 0))]
    inputs = [xp]
    if pack > 1:
        # Block-diagonal 0/1 indicator matrix: M[i, j] = 1 iff lanes i, j belong to the
        # same logical row.  (x*x) @ M = per-row squared norm broadcast over its lanes.
        groups = jnp.arange(lanes, dtype=jnp.int32) // d
        m = (groups[:, None] == groups[None, :]).astype(jnp.float32)
        in_specs = [pl.BlockSpec((lanes, lanes), lambda i: (0, 0))] + in_specs
        inputs = [m] + inputs

    out = pl.pallas_call(
        kernel,
        out_shape=jax.ShapeDtypeStruct((p_pad, lanes), orig_dtype),
        grid=(p_pad // tile_p,),
        in_specs=in_specs,
        out_specs=pl.BlockSpec((tile_p, lanes), lambda i: (i, 0)),
        compiler_params=pltpu.CompilerParams(
            dimension_semantics=("parallel",),
        ),
    )(*inputs)

    out = out.reshape(p_pad * pack, d)
    if p_pad * pack != n:
        out = out[:n]
    return out


def _reference(x, c_in, c_out):
    """Pure-JAX reference matching the PyTorch PoincareBall HypAct."""
    x = x.astype(jnp.float32)
    sqrt_cin, sqrt_cout = c_in ** 0.5, c_out ** 0.5
    xn = jnp.maximum(jnp.linalg.norm(x, axis=-1, keepdims=True), MIN_NORM)
    z = jnp.clip(sqrt_cin * xn, -1 + ARTANH_EPS, 1 - ARTANH_EPS)
    xt = (jnp.arctanh(z) / (sqrt_cin * xn)) * x
    xt = jax.nn.relu(xt)
    un = jnp.maximum(jnp.linalg.norm(xt, axis=-1, keepdims=True), MIN_NORM)
    g = jnp.tanh(sqrt_cout * un) * xt / (sqrt_cout * un)
    gn = jnp.maximum(jnp.linalg.norm(g, axis=-1, keepdims=True), MIN_NORM)
    maxnorm = (1 - PROJ_EPS) / sqrt_cout
    return jnp.where(gn > maxnorm, g / gn * maxnorm, g)


if __name__ == "__main__":
    key = jax.random.PRNGKey(0)
    c_in, c_out = 1.0, 0.5   # curvatures (HypAct has no learned parameters)

    # Small node-embedding batch, hidden=32; inputs scaled to lie inside the ball.
    N, D = 16, 32
    x = 0.1 * jax.random.normal(key, (N, D), dtype=jnp.float32)
    out = hyp_act(x, c_in, c_out)
    jax.block_until_ready(out)
    ref = _reference(x, c_in, c_out)
    assert out.shape == (N, D) and out.dtype == x.dtype
    assert jnp.allclose(out, ref, atol=1e-5, rtol=1e-5), "mismatch vs reference (small)"

    # Second check: ragged row count + multi-step grid (exercises padding & pipelining).
    N2 = 999
    x2 = 0.05 * jax.random.normal(jax.random.PRNGKey(1), (N2, D), dtype=jnp.float32)
    out2 = hyp_act(x2, c_in, c_out, max_block_rows=64)
    jax.block_until_ready(out2)
    ref2 = _reference(x2, c_in, c_out)
    assert out2.shape == (N2, D)
    assert jnp.allclose(out2, ref2, atol=1e-5, rtol=1e-5), "mismatch vs reference (ragged)"

    print("KERNEL_OK")
</pallas_src>

<mosaic_0001>
module attributes {stable_mosaic.version = 11 : i64} {
  func.func @_hypact_kernel(%arg0: i32, %arg1: memref<128x128xf32, #tpu.memory_space<vmem>>, %arg2: memref<8x128xf32, #tpu.memory_space<vmem>>, %arg3: memref<8x128xf32, #tpu.memory_space<vmem>>) attributes {dimension_semantics = [#tpu.dimension_semantics<parallel>], iteration_bounds = array<i64: 1>, scalar_prefetch = 0 : i64, scratch_operands = 0 : i64, tpu.core_type = #tpu.core_type<tc>, window_params = [{pipeline_mode = #tpu.pipeline_mode<synchronous>, transform_indices = @transform_0, window_bounds = array<i64: 128, 128>}, {transform_indices = @transform_1, window_bounds = array<i64: 8, 128>}, {transform_indices = @transform_2, window_bounds = array<i64: 8, 128>}]} {
    %c0 = arith.constant 0 : index
    %c0_0 = arith.constant 0 : index
    %0 = vector.load %arg2[%c0, %c0_0] : memref<8x128xf32, #tpu.memory_space<vmem>>, vector<8x128xf32>
    %c0_1 = arith.constant 0 : index
    %c0_2 = arith.constant 0 : index
    %1 = vector.load %arg1[%c0_1, %c0_2] : memref<128x128xf32, #tpu.memory_space<vmem>>, vector<128x128xf32>
    %2 = arith.mulf %0, %0 : vector<8x128xf32>
    %cst = arith.constant dense<0.000000e+00> : vector<8x128xf32>
    %3 = tpu.matmul %2, %1, %cst {dimension_numbers = #tpu.dot_dimension_numbers<[1], [0], [0], [1], [0, 0, 1, 1], [], []>, precision = #tpu.contract_precision<fp32>} : vector<8x128xf32>, vector<128x128xf32>, vector<8x128xf32> -> vector<8x128xf32>
    %cst_3 = arith.constant 1.000000e-30 : f32
    %4 = vector.broadcast %cst_3 : f32 to vector<8x128xf32>
    %5 = arith.maximumf %3, %4 : vector<8x128xf32>
    %6 = math.rsqrt %5 : vector<8x128xf32>
    %7 = arith.mulf %5, %6 : vector<8x128xf32>
    %cst_4 = arith.constant 1.000000e+00 : f32
    %8 = vector.broadcast %cst_4 : f32 to vector<8x128xf32>
    %9 = arith.mulf %8, %7 : vector<8x128xf32>
    %cst_5 = arith.constant -1.000000e+00 : f32
    %cst_6 = arith.constant 1.000000e+00 : f32
    %10 = vector.broadcast %cst_5 : f32 to vector<8x128xf32>
    %11 = arith.maximumf %10, %9 : vector<8x128xf32>
    %12 = vector.broadcast %cst_6 : f32 to vector<8x128xf32>
    %13 = arith.minimumf %12, %11 : vector<8x128xf32>
    %cst_7 = arith.constant 1.000000e+00 : f32
    %14 = vector.broadcast %cst_7 : f32 to vector<8x128xf32>
    %15 = arith.addf %14, %13 : vector<8x128xf32>
    %cst_8 = arith.constant 1.000000e+00 : f32
    %16 = vector.broadcast %cst_8 : f32 to vector<8x128xf32>
    %17 = arith.subf %16, %13 : vector<8x128xf32>
    %18 = arith.divf %15, %17 : vector<8x128xf32>
    %19 = math.log %18 : vector<8x128xf32>
    %cst_9 = arith.constant 5.000000e-01 : f32
    %20 = vector.broadcast %cst_9 : f32 to vector<8x128xf32>
    %21 = arith.mulf %20, %19 : vector<8x128xf32>
    %22 = arith.mulf %21, %6 : vector<8x128xf32>
    %cst_10 = arith.constant 1.000000e+00 : f32
    %23 = vector.broadcast %cst_10 : f32 to vector<8x128xf32>
    %24 = arith.mulf %22, %23 : vector<8x128xf32>
    %25 = arith.mulf %24, %0 : vector<8x128xf32>
    %cst_11 = arith.constant 0.000000e+00 : f32
    %26 = vector.broadcast %cst_11 : f32 to vector<8x128xf32>
    %27 = arith.maximumf %25, %26 : vector<8x128xf32>
    %28 = arith.mulf %27, %27 : vector<8x128xf32>
    %cst_12 = arith.constant dense<0.000000e+00> : vector<8x128xf32>
    %29 = tpu.matmul %28, %1, %cst_12 {dimension_numbers = #tpu.dot_dimension_numbers<[1], [0], [0], [1], [0, 0, 1, 1], [], []>, precision = #tpu.contract_precision<fp32>} : vector<8x128xf32>, vector<128x128xf32>, vector<8x128xf32> -> vector<8x128xf32>
    %cst_13 = arith.constant 1.000000e-30 : f32
    %30 = vector.broadcast %cst_13 : f32 to vector<8x128xf32>
    %31 = arith.maximumf %29, %30 : vector<8x128xf32>
    %32 = math.rsqrt %31 : vector<8x128xf32>
    %33 = arith.mulf %31, %32 : vector<8x128xf32>
    %cst_14 = arith.constant 0.707106769 : f32
    %34 = vector.broadcast %cst_14 : f32 to vector<8x128xf32>
    %35 = arith.mulf %34, %33 : vector<8x128xf32>
    %36 = math.tanh %35 : vector<8x128xf32>
    %cst_15 = arith.constant 0.995999991 : f32
    %37 = vector.broadcast %cst_15 : f32 to vector<8x128xf32>
    %38 = arith.minimumf %36, %37 : vector<8x128xf32>
    %cst_16 = arith.constant 1.41421354 : f32
    %39 = vector.broadcast %cst_16 : f32 to vector<8x128xf32>
    %40 = arith.mulf %32, %39 : vector<8x128xf32>
    %41 = arith.mulf %38, %40 : vector<8x128xf32>
    %42 = arith.mulf %41, %27 : vector<8x128xf32>
    %c0_17 = arith.constant 0 : index
    %c0_18 = arith.constant 0 : index
    %43 = vector.load %arg3[%c0_17, %c0_18] : memref<8x128xf32, #tpu.memory_space<vmem>>, vector<8x128xf32>
    tpu.vector_store %arg3[%c0_17, %c0_18], %42 {strides = array<i32>} : memref<8x128xf32, #tpu.memory_space<vmem>>, vector<8x128xf32>,
    return
  }
  func.func @transform_0(%arg0: i32) -> (i32, i32) {
    %c0_i32 = arith.constant 0 : i32
    %c0_i32_0 = arith.constant 0 : i32
    %c0_i32_1 = arith.constant 0 : i32
    return %c0_i32, %c0_i32_0 : i32, i32
  }
  func.func @transform_1(%arg0: i32) -> (i32, i32) {
    %c0_i32 = arith.constant 0 : i32
    %c0_i32_0 = arith.constant 0 : i32
    return %arg0, %c0_i32 : i32, i32
  }
  func.func @transform_2(%arg0: i32) -> (i32, i32) {
    %c0_i32 = arith.constant 0 : i32
    %c0_i32_0 = arith.constant 0 : i32
    return %arg0, %c0_i32 : i32, i32
  }
}

</mosaic_0001>

<llo_original>
// kernel: tpu_custom_call.1
$region0: #{tpu_custom_call.1}
  #allocation0 [shape = 'u32[]', space=smem, size = 0x4, offset = 0x4, fixed_abs, tag = 'smem constant byte address 0x4 - core index']
  #allocation1 [shape = 'u32[72,128]{1,0:T(1,128)}', space=vmem, size = 0x9000, scoped, tag = 'internal scratch']
  %s0 = inlined_call_operand.hbm [shape: f32[128,128], index: 0, kind: input, shape index: {}]
  %s1 = inlined_call_operand.hbm [shape: f32[8,128], index: 1, kind: input, shape index: {}]
  %s2 = inlined_call_operand.hbm [shape: f32[8,128], index: 2, kind: output, shape index: {}]
  %s3 = sld [smem:[#allocation0]]
  $region26: #{tpu_custom_call.1} parent=0
    _
  %s5 = ssub.s32 1, %s3
  %s6 = scalar_select 0, %s5, %s3
  $region1: #{tpu_custom_call.1} parent=0
    #allocation2 [shape = 'u8[65536]{0}', space=vmem, size = 0x10000, scoped, tag = 'input window, operand 0, single buffered']
    #allocation3 [shape = 's32[1]{0}', space=sflag, size = 0x4, scoped, tag = 'scoped memory for tpu_custom_call.1']
    #allocation4 [shape = 's32[1]{0}', space=sflag, size = 0x4, scoped, tag = 'scoped memory for tpu_custom_call.1']
    #allocation5 [shape = 'u8[4096]{0}', space=vmem, size = 0x1000, scoped, tag = 'input window, operand 1, single buffered']
    #allocation6 [shape = 's32[1]{0}', space=sflag, size = 0x4, scoped, tag = 'scoped memory for tpu_custom_call.1']
    #allocation7 [shape = 'u8[4096]{0}', space=vmem, size = 0x1000, scoped, tag = 'output window, operand 0, single buffered']
    %7 = vsyncpa [#allocation3], 0
    %8 = vsyncpa [#allocation6], 0
    %9 = vsyncpa [#allocation4], 0
    // Predicated region
    $region2: #{tpu_custom_call.1} parent=1 // pred_check
      _
    $region3: #{tpu_custom_call.1} parent=1 // pred_check_branch
      %11 = sbr.rel (0) target = $region5
    $region4: #{tpu_custom_call.1} parent=1 // pred_region
      %13 = vsyncadd [#allocation3], 0
      %s14 = sshll.u32 %s0, 4
      %s15 = int_to_ptr.hbm [resolvable:$true] %s14
      %s16 = sshll.u32 [#allocation2], 4
      %s17 = int_to_ptr.vmem [resolvable:$true] %s16
      %22 = dma.hbm_to_vmem [thread:$0]  %s15, 2048, %s17, [#allocation3], 128, 128, 8
    $region5: #{tpu_custom_call.1} parent=1 // pred_fallthru
      _
    // Predicated region
    $region6: #{tpu_custom_call.1} parent=1 // pred_check
      _
    $region7: #{tpu_custom_call.1} parent=1 // pred_check_branch
      %24 = sbr.rel (0) target = $region9
    $region8: #{tpu_custom_call.1} parent=1 // pred_region
      %26 = vsyncadd [#allocation6], 0
      %s28 = sshll.u32 %s1, 4
      %s29 = int_to_ptr.hbm [resolvable:$true] %s28
      %s30 = sshll.u32 [#allocation5], 4
      %s31 = int_to_ptr.vmem [resolvable:$true] %s30
      %33 = dma.hbm_to_vmem [thread:$0]  %s29, 128, %s31, [#allocation6]
    $region9: #{tpu_custom_call.1} parent=1 // pred_fallthru
      _
    // Predicated region
    $region10: #{tpu_custom_call.1} parent=1 // pred_check
      _
    $region11: #{tpu_custom_call.1} parent=1 // pred_check_branch
      %35 = sbr.rel (0) target = $region13
    $region12: #{tpu_custom_call.1} parent=1 // pred_region
      %37 = dma.done [#allocation3], 2048
    $region13: #{tpu_custom_call.1} parent=1 // pred_fallthru
      _
    // Predicated region
    $region14: #{tpu_custom_call.1} parent=1 // pred_check
      _
    $region15: #{tpu_custom_call.1} parent=1 // pred_check_branch
      %39 = sbr.rel (0) target = $region17
    $region16: #{tpu_custom_call.1} parent=1 // pred_region
      %41 = dma.done [#allocation6], 128
    $region17: #{tpu_custom_call.1} parent=1 // pred_fallthru
      _
    %v42 = vld [vmem:[#allocation5] sm:$0xff]
    %v43 = vld [vmem:[#allocation2] sm:$0xff]
    %v44 = vld [vmem:[#allocation2 + $0x8] sm:$0xff]
    %v45 = vld [vmem:[#allocation2 + $0x10] sm:$0xff]
    %v46 = vld [vmem:[#allocation2 + $0x18] sm:$0xff]
    %v47 = vld [vmem:[#allocation2 + $0x20] sm:$0xff]
    %v48 = vld [vmem:[#allocation2 + $0x28] sm:$0xff]
    %v49 = vld [vmem:[#allocation2 + $0x30] sm:$0xff]
    %v50 = vld [vmem:[#allocation2 + $0x38] sm:$0xff]
    %v51 = vld [vmem:[#allocation2 + $0x40] sm:$0xff]
    %v52 = vld [vmem:[#allocation2 + $0x48] sm:$0xff]
    %v53 = vld [vmem:[#allocation2 + $0x50] sm:$0xff]
    %v54 = vld [vmem:[#allocation2 + $0x58] sm:$0xff]
    %v55 = vld [vmem:[#allocation2 + $0x60] sm:$0xff]
    %v56 = vld [vmem:[#allocation2 + $0x68] sm:$0xff]
    %v57 = vld [vmem:[#allocation2 + $0x70] sm:$0xff]
    %v58 = vld [vmem:[#allocation2 + $0x78] sm:$0xff]
    %v59 = vmul.f32 %v42, %v42
    %v60 = vand.u32 %v58, 4294901760
    %61 = vmatpush.msra.mxu0 %v60
    %v62 = vand.u32 %v57, 4294901760
    %63 = vmatpush.msra.mxu0 %v62
    %v64 = vand.u32 %v56, 4294901760
    %65 = vmatpush.msra.mxu0 %v64
    %v66 = vand.u32 %v55, 4294901760
    %67 = vmatpush.msra.mxu0 %v66
    %v68 = vand.u32 %v54, 4294901760
    %69 = vmatpush.msra.mxu0 %v68
    %v70 = vand.u32 %v53, 4294901760
    %71 = vmatpush.msra.mxu0 %v70
    %v72 = vand.u32 %v52, 4294901760
    %73 = vmatpush.msra.mxu0 %v72
    %v74 = vand.u32 %v51, 4294901760
    %75 = vmatpush.msra.mxu0 %v74
    %v76 = vand.u32 %v50, 4294901760
    %77 = vmatpush.msra.mxu0 %v76
    %v78 = vand.u32 %v49, 4294901760
    %79 = vmatpush.msra.mxu0 %v78
    %v80 = vand.u32 %v48, 4294901760
    %81 = vmatpush.msra.mxu0 %v80
    %v82 = vand.u32 %v47, 4294901760
    %83 = vmatpush.msra.mxu0 %v82
    %v84 = vand.u32 %v46, 4294901760
    %85 = vmatpush.msra.mxu0 %v84
    %v86 = vand.u32 %v45, 4294901760
    %87 = vmatpush.msra.mxu0 %v86
    %v88 = vand.u32 %v44, 4294901760
    %89 = vmatpush.msra.mxu0 %v88
    %v90 = vand.u32 %v43, 4294901760
    %91 = vmatpush.msra.mxu0 %v90
    %v92 = vand.u32 %v59, 4294901760
    %v93 = vsub.f32 %v59, %v92
    %v94 = vand.u32 %v93, 4294901760
    %v95 = vsub.f32 %v93, %v94
    %v96 = vand.u32 %v95, 4294901760
    %97 = vmatmul.f32.gmra.mxu0 %v96
    %v98 = vpop.f32.mrf.mxu0
    %v99 = vadd.f32 0.0, %v98
    %100 = vdwg.mxu0
    %v101 = vand.u32 %v58, 4294901760
    %v102 = vsub.f32 %v58, %v101
    %v103 = vand.u32 %v102, 4294901760
    %v104 = vsub.f32 %v102, %v103
    %v105 = vand.u32 %v104, 4294901760
    %106 = vmatpush.msra.mxu0 %v105
    %v107 = vand.u32 %v57, 4294901760
    %v108 = vsub.f32 %v57, %v107
    %v109 = vand.u32 %v108, 4294901760
    %v110 = vsub.f32 %v108, %v109
    %v111 = vand.u32 %v110, 4294901760
    %112 = vmatpush.msra.mxu0 %v111
    %v113 = vand.u32 %v56, 4294901760
    %v114 = vsub.f32 %v56, %v113
    %v115 = vand.u32 %v114, 4294901760
    %v116 = vsub.f32 %v114, %v115
    %v117 = vand.u32 %v116, 4294901760
    %118 = vmatpush.msra.mxu0 %v117
    %v119 = vand.u32 %v55, 4294901760
    %v120 = vsub.f32 %v55, %v119
    %v121 = vand.u32 %v120, 4294901760
    %v122 = vsub.f32 %v120, %v121
    %v123 = vand.u32 %v122, 4294901760
    %124 = vmatpush.msra.mxu0 %v123
    %v125 = vand.u32 %v54, 4294901760
    %v126 = vsub.f32 %v54, %v125
    %v127 = vand.u32 %v126, 4294901760
    %v128 = vsub.f32 %v126, %v127
    %v129 = vand.u32 %v128, 4294901760
    %130 = vmatpush.msra.mxu0 %v129
    %v131 = vand.u32 %v53, 4294901760
    %v132 = vsub.f32 %v53, %v131
    %v133 = vand.u32 %v132, 4294901760
    %v134 = vsub.f32 %v132, %v133
    %v135 = vand.u32 %v134, 4294901760
    %136 = vmatpush.msra.mxu0 %v135
    %v137 = vand.u32 %v52, 4294901760
    %v138 = vsub.f32 %v52, %v137
    %v139 = vand.u32 %v138, 4294901760
    %v140 = vsub.f32 %v138, %v139
    %v141 = vand.u32 %v140, 4294901760
    %142 = vmatpush.msra.mxu0 %v141
    %v143 = vand.u32 %v51, 4294901760
    %v144 = vsub.f32 %v51, %v143
    %v145 = vand.u32 %v144, 4294901760
    %v146 = vsub.f32 %v144, %v145
    %v147 = vand.u32 %v146, 4294901760
    %148 = vmatpush.msra.mxu0 %v147
    %v149 = vand.u32 %v50, 4294901760
    %v150 = vsub.f32 %v50, %v149
    %v151 = vand.u32 %v150, 4294901760
    %v152 = vsub.f32 %v150, %v151
    %v153 = vand.u32 %v152, 4294901760
    %154 = vmatpush.msra.mxu0 %v153
    %v155 = vand.u32 %v49, 4294901760
    %v156 = vsub.f32 %v49, %v155
    %v157 = vand.u32 %v156, 4294901760
    %v158 = vsub.f32 %v156, %v157
    %v159 = vand.u32 %v158, 4294901760
    %160 = vmatpush.msra.mxu0 %v159
    %v161 = vand.u32 %v48, 4294901760
    %v162 = vsub.f32 %v48, %v161
    %v163 = vand.u32 %v162, 4294901760
    %v164 = vsub.f32 %v162, %v163
    %v165 = vand.u32 %v164, 4294901760
    %166 = vmatpush.msra.mxu0 %v165
    %v167 = vand.u32 %v47, 4294901760
    %v168 = vsub.f32 %v47, %v167
    %v169 = vand.u32 %v168, 4294901760
    %v170 = vsub.f32 %v168, %v169
    %v171 = vand.u32 %v170, 4294901760
    %172 = vmatpush.msra.mxu0 %v171
    %v173 = vand.u32 %v46, 4294901760
    %v174 = vsub.f32 %v46, %v173
    %v175 = vand.u32 %v174, 4294901760
    %v176 = vsub.f32 %v174, %v175
    %v177 = vand.u32 %v176, 4294901760
    %178 = vmatpush.msra.mxu0 %v177
    %v179 = vand.u32 %v45, 4294901760
    %v180 = vsub.f32 %v45, %v179
    %v181 = vand.u32 %v180, 4294901760
    %v182 = vsub.f32 %v180, %v181
    %v183 = vand.u32 %v182, 4294901760
    %184 = vmatpush.msra.mxu0 %v183
    %v185 = vand.u32 %v44, 4294901760
    %v186 = vsub.f32 %v44, %v185
    %v187 = vand.u32 %v186, 4294901760
    %v188 = vsub.f32 %v186, %v187
    %v189 = vand.u32 %v188, 4294901760
    %190 = vmatpush.msra.mxu0 %v189
    %v191 = vand.u32 %v43, 4294901760
    %v192 = vsub.f32 %v43, %v191
    %v193 = vand.u32 %v192, 4294901760
    %v194 = vsub.f32 %v192, %v193
    %v195 = vand.u32 %v194, 4294901760
    %196 = vmatpush.msra.mxu0 %v195
    %v197 = vand.u32 %v59, 4294901760
    %198 = vmatmul.f32.gmra.mxu0 %v197
    %v199 = vpop.f32.mrf.mxu0
    %v200 = vadd.f32 %v99, %v199
    %201 = vdwg.mxu0
    %v202 = vand.u32 %v58, 4294901760
    %v203 = vsub.f32 %v58, %v202
    %204 = vmatpush.msra.mxu0 %v203
    %v205 = vand.u32 %v57, 4294901760
    %v206 = vsub.f32 %v57, %v205
    %207 = vmatpush.msra.mxu0 %v206
    %v208 = vand.u32 %v56, 4294901760
    %v209 = vsub.f32 %v56, %v208
    %210 = vmatpush.msra.mxu0 %v209
    %v211 = vand.u32 %v55, 4294901760
    %v212 = vsub.f32 %v55, %v211
    %213 = vmatpush.msra.mxu0 %v212
    %v214 = vand.u32 %v54, 4294901760
    %v215 = vsub.f32 %v54, %v214
    %216 = vmatpush.msra.mxu0 %v215
    %v217 = vand.u32 %v53, 4294901760
    %v218 = vsub.f32 %v53, %v217
    %219 = vmatpush.msra.mxu0 %v218
    %v220 = vand.u32 %v52, 4294901760
    %v221 = vsub.f32 %v52, %v220
    %222 = vmatpush.msra.mxu0 %v221
    %v223 = vand.u32 %v51, 4294901760
    %v224 = vsub.f32 %v51, %v223
    %225 = vmatpush.msra.mxu0 %v224
    %v226 = vand.u32 %v50, 4294901760
    %v227 = vsub.f32 %v50, %v226
    %228 = vmatpush.msra.mxu0 %v227
    %v229 = vand.u32 %v49, 4294901760
    %v230 = vsub.f32 %v49, %v229
    %231 = vmatpush.msra.mxu0 %v230
    %v232 = vand.u32 %v48, 4294901760
    %v233 = vsub.f32 %v48, %v232
    %234 = vmatpush.msra.mxu0 %v233
    %v235 = vand.u32 %v47, 4294901760
    %v236 = vsub.f32 %v47, %v235
    %237 = vmatpush.msra.mxu0 %v236
    %v238 = vand.u32 %v46, 4294901760
    %v239 = vsub.f32 %v46, %v238
    %240 = vmatpush.msra.mxu0 %v239
    %v241 = vand.u32 %v45, 4294901760
    %v242 = vsub.f32 %v45, %v241
    %243 = vmatpush.msra.mxu0 %v242
    %v244 = vand.u32 %v44, 4294901760
    %v245 = vsub.f32 %v44, %v244
    %246 = vmatpush.msra.mxu0 %v245
    %v247 = vand.u32 %v43, 4294901760
    %v248 = vsub.f32 %v43, %v247
    %249 = vmatpush.msra.mxu0 %v248
    %v250 = vand.u32 %v59, 4294901760
    %v251 = vsub.f32 %v59, %v250
    %252 = vmatmul.f32.gmra.mxu0 %v251
    %v253 = vpop.f32.mrf.mxu0
    %v254 = vadd.f32 %v200, %v253
    %255 = vdwg.mxu0
    %v256 = vand.u32 %v58, 4294901760
    %257 = vmatpush.msra.mxu0 %v256
    %v258 = vand.u32 %v57, 4294901760
    %259 = vmatpush.msra.mxu0 %v258
    %v260 = vand.u32 %v56, 4294901760
    %261 = vmatpush.msra.mxu0 %v260
    %v262 = vand.u32 %v55, 4294901760
    %263 = vmatpush.msra.mxu0 %v262
    %v264 = vand.u32 %v54, 4294901760
    %265 = vmatpush.msra.mxu0 %v264
    %v266 = vand.u32 %v53, 4294901760
    %267 = vmatpush.msra.mxu0 %v266
    %v268 = vand.u32 %v52, 4294901760
    %269 = vmatpush.msra.mxu0 %v268
    %v270 = vand.u32 %v51, 4294901760
    %271 = vmatpush.msra.mxu0 %v270
    %v272 = vand.u32 %v50, 4294901760
    %273 = vmatpush.msra.mxu0 %v272
    %v274 = vand.u32 %v49, 4294901760
    %275 = vmatpush.msra.mxu0 %v274
    %v276 = vand.u32 %v48, 4294901760
    %277 = vmatpush.msra.mxu0 %v276
    %v278 = vand.u32 %v47, 4294901760
    %279 = vmatpush.msra.mxu0 %v278
    %v280 = vand.u32 %v46, 4294901760
    %281 = vmatpush.msra.mxu0 %v280
    %v282 = vand.u32 %v45, 4294901760
    %283 = vmatpush.msra.mxu0 %v282
    %v284 = vand.u32 %v44, 4294901760
    %285 = vmatpush.msra.mxu0 %v284
    %v286 = vand.u32 %v43, 4294901760
    %287 = vmatpush.msra.mxu0 %v286
    %v288 = vand.u32 %v59, 4294901760
    %v289 = vsub.f32 %v59, %v288
    %v290 = vand.u32 %v289, 4294901760
    %291 = vmatmul.f32.gmra.mxu0 %v290
    %v292 = vpop.f32.mrf.mxu0
    %v293 = vadd.f32 %v254, %v292
    %294 = vdwg.mxu0
    %v295 = vand.u32 %v58, 4294901760
    %v296 = vsub.f32 %v58, %v295
    %v297 = vand.u32 %v296, 4294901760
    %298 = vmatpush.msra.mxu0 %v297
    %v299 = vand.u32 %v57, 4294901760
    %v300 = vsub.f32 %v57, %v299
    %v301 = vand.u32 %v300, 4294901760
    %302 = vmatpush.msra.mxu0 %v301
    %v303 = vand.u32 %v56, 4294901760
    %v304 = vsub.f32 %v56, %v303
    %v305 = vand.u32 %v304, 4294901760
    %306 = vmatpush.msra.mxu0 %v305
    %v307 = vand.u32 %v55, 4294901760
    %v308 = vsub.f32 %v55, %v307
    %v309 = vand.u32 %v308, 4294901760
    %310 = vmatpush.msra.mxu0 %v309
    %v311 = vand.u32 %v54, 4294901760
    %v312 = vsub.f32 %v54, %v311
    %v313 = vand.u32 %v312, 4294901760
    %314 = vmatpush.msra.mxu0 %v313
    %v315 = vand.u32 %v53, 4294901760
    %v316 = vsub.f32 %v53, %v315
    %v317 = vand.u32 %v316, 4294901760
    %318 = vmatpush.msra.mxu0 %v317
    %v319 = vand.u32 %v52, 4294901760
    %v320 = vsub.f32 %v52, %v319
    %v321 = vand.u32 %v320, 4294901760
    %322 = vmatpush.msra.mxu0 %v321
    %v323 = vand.u32 %v51, 4294901760
    %v324 = vsub.f32 %v51, %v323
    %v325 = vand.u32 %v324, 4294901760
    %326 = vmatpush.msra.mxu0 %v325
    %v327 = vand.u32 %v50, 4294901760
    %v328 = vsub.f32 %v50, %v327
    %v329 = vand.u32 %v328, 4294901760
    %330 = vmatpush.msra.mxu0 %v329
    %v331 = vand.u32 %v49, 4294901760
    %v332 = vsub.f32 %v49, %v331
    %v333 = vand.u32 %v332, 4294901760
    %334 = vmatpush.msra.mxu0 %v333
    %v335 = vand.u32 %v48, 4294901760
    %v336 = vsub.f32 %v48, %v335
    %v337 = vand.u32 %v336, 4294901760
    %338 = vmatpush.msra.mxu0 %v337
    %v339 = vand.u32 %v47, 4294901760
    %v340 = vsub.f32 %v47, %v339
    %v341 = vand.u32 %v340, 4294901760
    %342 = vmatpush.msra.mxu0 %v341
    %v343 = vand.u32 %v46, 4294901760
    %v344 = vsub.f32 %v46, %v343
    %v345 = vand.u32 %v344, 4294901760
    %346 = vmatpush.msra.mxu0 %v345
    %v347 = vand.u32 %v45, 4294901760
    %v348 = vsub.f32 %v45, %v347
    %v349 = vand.u32 %v348, 4294901760
    %350 = vmatpush.msra.mxu0 %v349
    %v351 = vand.u32 %v44, 4294901760
    %v352 = vsub.f32 %v44, %v351
    %v353 = vand.u32 %v352, 4294901760
    %354 = vmatpush.msra.mxu0 %v353
    %v355 = vand.u32 %v43, 4294901760
    %v356 = vsub.f32 %v43, %v355
    %v357 = vand.u32 %v356, 4294901760
    %358 = vmatpush.msra.mxu0 %v357
    %v359 = vand.u32 %v59, 4294901760
    %360 = vmatmul.f32.gmra.mxu0 %v359
    %v361 = vpop.f32.mrf.mxu0
    %v362 = vadd.f32 %v293, %v361
    %363 = vdwg.mxu0
    %v364 = vand.u32 %v58, 4294901760
    %365 = vmatpush.msra.mxu0 %v364
    %v366 = vand.u32 %v57, 4294901760
    %367 = vmatpush.msra.mxu0 %v366
    %v368 = vand.u32 %v56, 4294901760
    %369 = vmatpush.msra.mxu0 %v368
    %v370 = vand.u32 %v55, 4294901760
    %371 = vmatpush.msra.mxu0 %v370
    %v372 = vand.u32 %v54, 4294901760
    %373 = vmatpush.msra.mxu0 %v372
    %v374 = vand.u32 %v53, 4294901760
    %375 = vmatpush.msra.mxu0 %v374
    %v376 = vand.u32 %v52, 4294901760
    %377 = vmatpush.msra.mxu0 %v376
    %v378 = vand.u32 %v51, 4294901760
    %379 = vmatpush.msra.mxu0 %v378
    %v380 = vand.u32 %v50, 4294901760
    %381 = vmatpush.msra.mxu0 %v380
    %v382 = vand.u32 %v49, 4294901760
    %383 = vmatpush.msra.mxu0 %v382
    %v384 = vand.u32 %v48, 4294901760
    %385 = vmatpush.msra.mxu0 %v384
    %v386 = vand.u32 %v47, 4294901760
    %387 = vmatpush.msra.mxu0 %v386
    %v388 = vand.u32 %v46, 4294901760
    %389 = vmatpush.msra.mxu0 %v388
    %v390 = vand.u32 %v45, 4294901760
    %391 = vmatpush.msra.mxu0 %v390
    %v392 = vand.u32 %v44, 4294901760
    %393 = vmatpush.msra.mxu0 %v392
    %v394 = vand.u32 %v43, 4294901760
    %395 = vmatpush.msra.mxu0 %v394
    %v396 = vand.u32 %v59, 4294901760
    %397 = vmatmul.f32.gmra.mxu0 %v396
    %v398 = vpop.f32.mrf.mxu0
    %v399 = vadd.f32 %v362, %v398
    %400 = vdwg.mxu0
    %v401 = vmax.f32 %v399, 1e-30
    %v402 = vrsqrt.pop %v401
    %v403 = vmul.f32 %v402, %v401
    %v404 = vmul.f32 %v403, %v402
    %v405 = vmul.f32 0.5, %v404
    %v406 = vsub.f32 1.5, %v405
    %v407 = vmul.f32 %v402, %v406
    %vm408 = vweird.f32 %v401
    %vm409 = vweird.f32 %v402
    %vm410 = vmor %vm408, %vm409
    %v411 = vsel %vm410, %v402, %v407
    %v412 = vmul.f32 %v401, %v411
    %v413 = vmax.f32 %v412, -1.0
    %v414 = vmin.f32 %v413, 1.0
    %v415 = vadd.f32 %v414, 1.0
    %v416 = vsub.f32 1.0, %v414
    %v417 = vrcp.pop %v416
    %v418 = vmul.f32 %v416, %v417
    %v419 = vsub.f32 1.0, %v418
    %v420 = vmul.f32 %v417, %v419
    %v421 = vadd.f32 %v417, %v420
    %vm422 = vweird.f32 %v416
    %vm423 = vweird.f32 %v417
    %vm424 = vmor %vm422, %vm423
    %v425 = vsel %vm424, %v417, %v421
    %v426 = vand.u32 2147483647, %v416
    %vm427 = vcmp.eq.f32.partialorder %v426, 8.507059e+37
    %v428 = vand.u32 %v416, 2147483648
    %v429 = vor.u32 1.1754944e-38, %v428
    %v430 = vsel %vm427, %v429, %v425
    %v431 = vmul.f32 %v415, %v430
    %v432 = vlog2.pop %v431
    %v433 = vmul.f32 %v432, 0.6931472
    %v434 = vmul.f32 %v433, 0.5
    %v435 = vmul.f32 %v434, %v411
    %v436 = vmul.f32 %v435, %v42
    %v437 = vmax.f32 %v436, 0.0
    %v438 = vmul.f32 %v437, %v437
    %v439 = vand.u32 %v58, 4294901760
    %440 = vmatpush.msra.mxu0 %v439
    %v441 = vand.u32 %v57, 4294901760
    %442 = vmatpush.msra.mxu0 %v441
    %v443 = vand.u32 %v56, 4294901760
    %444 = vmatpush.msra.mxu0 %v443
    %v445 = vand.u32 %v55, 4294901760
    %446 = vmatpush.msra.mxu0 %v445
    %v447 = vand.u32 %v54, 4294901760
    %448 = vmatpush.msra.mxu0 %v447
    %v449 = vand.u32 %v53, 4294901760
    %450 = vmatpush.msra.mxu0 %v449
    %v451 = vand.u32 %v52, 4294901760
    %452 = vmatpush.msra.mxu0 %v451
    %v453 = vand.u32 %v51, 4294901760
    %454 = vmatpush.msra.mxu0 %v453
    %v455 = vand.u32 %v50, 4294901760
    %456 = vmatpush.msra.mxu0 %v455
    %v457 = vand.u32 %v49, 4294901760
    %458 = vmatpush.msra.mxu0 %v457
    %v459 = vand.u32 %v48, 4294901760
    %460 = vmatpush.msra.mxu0 %v459
    %v461 = vand.u32 %v47, 4294901760
    %462 = vmatpush.msra.mxu0 %v461
    %v463 = vand.u32 %v46, 4294901760
    %464 = vmatpush.msra.mxu0 %v463
    %v465 = vand.u32 %v45, 4294901760
    %466 = vmatpush.msra.mxu0 %v465
    %v467 = vand.u32 %v44, 4294901760
    %468 = vmatpush.msra.mxu0 %v467
    %v469 = vand.u32 %v43, 4294901760
    %470 = vmatpush.msra.mxu0 %v469
    %v471 = vand.u32 %v438, 4294901760
    %v472 = vsub.f32 %v438, %v471
    %v473 = vand.u32 %v472, 4294901760
    %v474 = vsub.f32 %v472, %v473
    %v475 = vand.u32 %v474, 4294901760
    %476 = vmatmul.f32.gmra.mxu0 %v475
    %v477 = vpop.f32.mrf.mxu0
    %v478 = vadd.f32 0.0, %v477
    %479 = vdwg.mxu0
    %v480 = vand.u32 %v58, 4294901760
    %v481 = vsub.f32 %v58, %v480
    %v482 = vand.u32 %v481, 4294901760
    %v483 = vsub.f32 %v481, %v482
    %v484 = vand.u32 %v483, 4294901760
    %485 = vmatpush.msra.mxu0 %v484
    %v486 = vand.u32 %v57, 4294901760
    %v487 = vsub.f32 %v57, %v486
    %v488 = vand.u32 %v487, 4294901760
    %v489 = vsub.f32 %v487, %v488
    %v490 = vand.u32 %v489, 4294901760
    %491 = vmatpush.msra.mxu0 %v490
    %v492 = vand.u32 %v56, 4294901760
    %v493 = vsub.f32 %v56, %v492
    %v494 = vand.u32 %v493, 4294901760
    %v495 = vsub.f32 %v493, %v494
    %v496 = vand.u32 %v495, 4294901760
    %497 = vmatpush.msra.mxu0 %v496
    %v498 = vand.u32 %v55, 4294901760
    %v499 = vsub.f32 %v55, %v498
    %v500 = vand.u32 %v499, 4294901760
    %v501 = vsub.f32 %v499, %v500
    %v502 = vand.u32 %v501, 4294901760
    %503 = vmatpush.msra.mxu0 %v502
    %v504 = vand.u32 %v54, 4294901760
    %v505 = vsub.f32 %v54, %v504
    %v506 = vand.u32 %v505, 4294901760
    %v507 = vsub.f32 %v505, %v506
    %v508 = vand.u32 %v507, 4294901760
    %509 = vmatpush.msra.mxu0 %v508
    %v510 = vand.u32 %v53, 4294901760
    %v511 = vsub.f32 %v53, %v510
    %v512 = vand.u32 %v511, 4294901760
    %v513 = vsub.f32 %v511, %v512
    %v514 = vand.u32 %v513, 4294901760
    %515 = vmatpush.msra.mxu0 %v514
    %v516 = vand.u32 %v52, 4294901760
    %v517 = vsub.f32 %v52, %v516
    %v518 = vand.u32 %v517, 4294901760
    %v519 = vsub.f32 %v517, %v518
    %v520 = vand.u32 %v519, 4294901760
    %521 = vmatpush.msra.mxu0 %v520
    %v522 = vand.u32 %v51, 4294901760
    %v523 = vsub.f32 %v51, %v522
    %v524 = vand.u32 %v523, 4294901760
    %v525 = vsub.f32 %v523, %v524
    %v526 = vand.u32 %v525, 4294901760
    %527 = vmatpush.msra.mxu0 %v526
    %v528 = vand.u32 %v50, 4294901760
    %v529 = vsub.f32 %v50, %v528
    %v530 = vand.u32 %v529, 4294901760
    %v531 = vsub.f32 %v529, %v530
    %v532 = vand.u32 %v531, 4294901760
    %533 = vmatpush.msra.mxu0 %v532
    %v534 = vand.u32 %v49, 4294901760
    %v535 = vsub.f32 %v49, %v534
    %v536 = vand.u32 %v535, 4294901760
    %v537 = vsub.f32 %v535, %v536
    %v538 = vand.u32 %v537, 4294901760
    %539 = vmatpush.msra.mxu0 %v538
    %v540 = vand.u32 %v48, 4294901760
    %v541 = vsub.f32 %v48, %v540
    %v542 = vand.u32 %v541, 4294901760
    %v543 = vsub.f32 %v541, %v542
    %v544 = vand.u32 %v543, 4294901760
    %545 = vmatpush.msra.mxu0 %v544
    %v546 = vand.u32 %v47, 4294901760
    %v547 = vsub.f32 %v47, %v546
    %v548 = vand.u32 %v547, 4294901760
    %v549 = vsub.f32 %v547, %v548
    %v550 = vand.u32 %v549, 4294901760
    %551 = vmatpush.msra.mxu0 %v550
    %v552 = vand.u32 %v46, 4294901760
    %v553 = vsub.f32 %v46, %v552
    %v554 = vand.u32 %v553, 4294901760
    %v555 = vsub.f32 %v553, %v554
    %v556 = vand.u32 %v555, 4294901760
    %557 = vmatpush.msra.mxu0 %v556
    %v558 = vand.u32 %v45, 4294901760
    %v559 = vsub.f32 %v45, %v558
    %v560 = vand.u32 %v559, 4294901760
    %v561 = vsub.f32 %v559, %v560
    %v562 = vand.u32 %v561, 4294901760
    %563 = vmatpush.msra.mxu0 %v562
    %v564 = vand.u32 %v44, 4294901760
    %v565 = vsub.f32 %v44, %v564
    %v566 = vand.u32 %v565, 4294901760
    %v567 = vsub.f32 %v565, %v566
    %v568 = vand.u32 %v567, 4294901760
    %569 = vmatpush.msra.mxu0 %v568
    %v570 = vand.u32 %v43, 4294901760
    %v571 = vsub.f32 %v43, %v570
    %v572 = vand.u32 %v571, 4294901760
    %v573 = vsub.f32 %v571, %v572
    %v574 = vand.u32 %v573, 4294901760
    %575 = vmatpush.msra.mxu0 %v574
    %v576 = vand.u32 %v438, 4294901760
    %577 = vmatmul.f32.gmra.mxu0 %v576
    %v578 = vpop.f32.mrf.mxu0
    %v579 = vadd.f32 %v478, %v578
    %580 = vdwg.mxu0
    %v581 = vand.u32 %v58, 4294901760
    %v582 = vsub.f32 %v58, %v581
    %583 = vmatpush.msra.mxu0 %v582
    %v584 = vand.u32 %v57, 4294901760
    %v585 = vsub.f32 %v57, %v584
    %586 = vmatpush.msra.mxu0 %v585
    %v587 = vand.u32 %v56, 4294901760
    %v588 = vsub.f32 %v56, %v587
    %589 = vmatpush.msra.mxu0 %v588
    %v590 = vand.u32 %v55, 4294901760
    %v591 = vsub.f32 %v55, %v590
    %592 = vmatpush.msra.mxu0 %v591
    %v593 = vand.u32 %v54, 4294901760
    %v594 = vsub.f32 %v54, %v593
    %595 = vmatpush.msra.mxu0 %v594
    %v596 = vand.u32 %v53, 4294901760
    %v597 = vsub.f32 %v53, %v596
    %598 = vmatpush.msra.mxu0 %v597
    %v599 = vand.u32 %v52, 4294901760
    %v600 = vsub.f32 %v52, %v599
    %601 = vmatpush.msra.mxu0 %v600
    %v602 = vand.u32 %v51, 4294901760
    %v603 = vsub.f32 %v51, %v602
    %604 = vmatpush.msra.mxu0 %v603
    %v605 = vand.u32 %v50, 4294901760
    %v606 = vsub.f32 %v50, %v605
    %607 = vmatpush.msra.mxu0 %v606
    %v608 = vand.u32 %v49, 4294901760
    %v609 = vsub.f32 %v49, %v608
    %610 = vmatpush.msra.mxu0 %v609
    %v611 = vand.u32 %v48, 4294901760
    %v612 = vsub.f32 %v48, %v611
    %613 = vmatpush.msra.mxu0 %v612
    %v614 = vand.u32 %v47, 4294901760
    %v615 = vsub.f32 %v47, %v614
    %616 = vmatpush.msra.mxu0 %v615
    %v617 = vand.u32 %v46, 4294901760
    %v618 = vsub.f32 %v46, %v617
    %619 = vmatpush.msra.mxu0 %v618
    %v620 = vand.u32 %v45, 4294901760
    %v621 = vsub.f32 %v45, %v620
    %622 = vmatpush.msra.mxu0 %v621
    %v623 = vand.u32 %v44, 4294901760
    %v624 = vsub.f32 %v44, %v623
    %625 = vmatpush.msra.mxu0 %v624
    %v626 = vand.u32 %v43, 4294901760
    %v627 = vsub.f32 %v43, %v626
    %628 = vmatpush.msra.mxu0 %v627
    %v629 = vand.u32 %v438, 4294901760
    %v630 = vsub.f32 %v438, %v629
    %631 = vmatmul.f32.gmra.mxu0 %v630
    %v632 = vpop.f32.mrf.mxu0
    %v633 = vadd.f32 %v579, %v632
    %634 = vdwg.mxu0
    %v635 = vand.u32 %v58, 4294901760
    %636 = vmatpush.msra.mxu0 %v635
    %v637 = vand.u32 %v57, 4294901760
    %638 = vmatpush.msra.mxu0 %v637
    %v639 = vand.u32 %v56, 4294901760
    %640 = vmatpush.msra.mxu0 %v639
    %v641 = vand.u32 %v55, 4294901760
    %642 = vmatpush.msra.mxu0 %v641
    %v643 = vand.u32 %v54, 4294901760
    %644 = vmatpush.msra.mxu0 %v643
    %v645 = vand.u32 %v53, 4294901760
    %646 = vmatpush.msra.mxu0 %v645
    %v647 = vand.u32 %v52, 4294901760
    %648 = vmatpush.msra.mxu0 %v647
    %v649 = vand.u32 %v51, 4294901760
    %650 = vmatpush.msra.mxu0 %v649
    %v651 = vand.u32 %v50, 4294901760
    %652 = vmatpush.msra.mxu0 %v651
    %v653 = vand.u32 %v49, 4294901760
    %654 = vmatpush.msra.mxu0 %v653
    %v655 = vand.u32 %v48, 4294901760
    %656 = vmatpush.msra.mxu0 %v655
    %v657 = vand.u32 %v47, 4294901760
    %658 = vmatpush.msra.mxu0 %v657
    %v659 = vand.u32 %v46, 4294901760
    %660 = vmatpush.msra.mxu0 %v659
    %v661 = vand.u32 %v45, 4294901760
    %662 = vmatpush.msra.mxu0 %v661
    %v663 = vand.u32 %v44, 4294901760
    %664 = vmatpush.msra.mxu0 %v663
    %v665 = vand.u32 %v43, 4294901760
    %666 = vmatpush.msra.mxu0 %v665
    %v667 = vand.u32 %v438, 4294901760
    %v668 = vsub.f32 %v438, %v667
    %v669 = vand.u32 %v668, 4294901760
    %670 = vmatmul.f32.gmra.mxu0 %v669
    %v671 = vpop.f32.mrf.mxu0
    %v672 = vadd.f32 %v633, %v671
    %673 = vdwg.mxu0
    %v674 = vand.u32 %v58, 4294901760
    %v675 = vsub.f32 %v58, %v674
    %v676 = vand.u32 %v675, 4294901760
    %677 = vmatpush.msra.mxu0 %v676
    %v678 = vand.u32 %v57, 4294901760
    %v679 = vsub.f32 %v57, %v678
    %v680 = vand.u32 %v679, 4294901760
    %681 = vmatpush.msra.mxu0 %v680
    %v682 = vand.u32 %v56, 4294901760
    %v683 = vsub.f32 %v56, %v682
    %v684 = vand.u32 %v683, 4294901760
    %685 = vmatpush.msra.mxu0 %v684
    %v686 = vand.u32 %v55, 4294901760
    %v687 = vsub.f32 %v55, %v686
    %v688 = vand.u32 %v687, 4294901760
    %689 = vmatpush.msra.mxu0 %v688
    %v690 = vand.u32 %v54, 4294901760
    %v691 = vsub.f32 %v54, %v690
    %v692 = vand.u32 %v691, 4294901760
    %693 = vmatpush.msra.mxu0 %v692
    %v694 = vand.u32 %v53, 4294901760
    %v695 = vsub.f32 %v53, %v694
    %v696 = vand.u32 %v695, 4294901760
    %697 = vmatpush.msra.mxu0 %v696
    %v698 = vand.u32 %v52, 4294901760
    %v699 = vsub.f32 %v52, %v698
    %v700 = vand.u32 %v699, 4294901760
    %701 = vmatpush.msra.mxu0 %v700
    %v702 = vand.u32 %v51, 4294901760
    %v703 = vsub.f32 %v51, %v702
    %v704 = vand.u32 %v703, 4294901760
    %705 = vmatpush.msra.mxu0 %v704
    %v706 = vand.u32 %v50, 4294901760
    %v707 = vsub.f32 %v50, %v706
    %v708 = vand.u32 %v707, 4294901760
    %709 = vmatpush.msra.mxu0 %v708
    %v710 = vand.u32 %v49, 4294901760
    %v711 = vsub.f32 %v49, %v710
    %v712 = vand.u32 %v711, 4294901760
    %713 = vmatpush.msra.mxu0 %v712
    %v714 = vand.u32 %v48, 4294901760
    %v715 = vsub.f32 %v48, %v714
    %v716 = vand.u32 %v715, 4294901760
    %717 = vmatpush.msra.mxu0 %v716
    %v718 = vand.u32 %v47, 4294901760
    %v719 = vsub.f32 %v47, %v718
    %v720 = vand.u32 %v719, 4294901760
    %721 = vmatpush.msra.mxu0 %v720
    %v722 = vand.u32 %v46, 4294901760
    %v723 = vsub.f32 %v46, %v722
    %v724 = vand.u32 %v723, 4294901760
    %725 = vmatpush.msra.mxu0 %v724
    %v726 = vand.u32 %v45, 4294901760
    %v727 = vsub.f32 %v45, %v726
    %v728 = vand.u32 %v727, 4294901760
    %729 = vmatpush.msra.mxu0 %v728
    %v730 = vand.u32 %v44, 4294901760
    %v731 = vsub.f32 %v44, %v730
    %v732 = vand.u32 %v731, 4294901760
    %733 = vmatpush.msra.mxu0 %v732
    %v734 = vand.u32 %v43, 4294901760
    %v735 = vsub.f32 %v43, %v734
    %v736 = vand.u32 %v735, 4294901760
    %737 = vmatpush.msra.mxu0 %v736
    %v738 = vand.u32 %v438, 4294901760
    %739 = vmatmul.f32.gmra.mxu0 %v738
    %v740 = vpop.f32.mrf.mxu0
    %v741 = vadd.f32 %v672, %v740
    %742 = vdwg.mxu0
    %v743 = vand.u32 %v58, 4294901760
    %744 = vmatpush.msra.mxu0 %v743
    %v745 = vand.u32 %v57, 4294901760
    %746 = vmatpush.msra.mxu0 %v745
    %v747 = vand.u32 %v56, 4294901760
    %748 = vmatpush.msra.mxu0 %v747
    %v749 = vand.u32 %v55, 4294901760
    %750 = vmatpush.msra.mxu0 %v749
    %v751 = vand.u32 %v54, 4294901760
    %752 = vmatpush.msra.mxu0 %v751
    %v753 = vand.u32 %v53, 4294901760
    %754 = vmatpush.msra.mxu0 %v753
    %v755 = vand.u32 %v52, 4294901760
    %756 = vmatpush.msra.mxu0 %v755
    %v757 = vand.u32 %v51, 4294901760
    %758 = vmatpush.msra.mxu0 %v757
    %v759 = vand.u32 %v50, 4294901760
    %760 = vmatpush.msra.mxu0 %v759
    %v761 = vand.u32 %v49, 4294901760
    %762 = vmatpush.msra.mxu0 %v761
    %v763 = vand.u32 %v48, 4294901760
    %764 = vmatpush.msra.mxu0 %v763
    %v765 = vand.u32 %v47, 4294901760
    %766 = vmatpush.msra.mxu0 %v765
    %v767 = vand.u32 %v46, 4294901760
    %768 = vmatpush.msra.mxu0 %v767
    %v769 = vand.u32 %v45, 4294901760
    %770 = vmatpush.msra.mxu0 %v769
    %v771 = vand.u32 %v44, 4294901760
    %772 = vmatpush.msra.mxu0 %v771
    %v773 = vand.u32 %v43, 4294901760
    %774 = vmatpush.msra.mxu0 %v773
    %v775 = vand.u32 %v438, 4294901760
    %776 = vmatmul.f32.gmra.mxu0 %v775
    %v777 = vpop.f32.mrf.mxu0
    %v778 = vadd.f32 %v741, %v777
    %779 = vdwg.mxu0
    %v780 = vmax.f32 %v778, 1e-30
    %v781 = vrsqrt.pop %v780
    %v782 = vmul.f32 %v781, %v780
    %v783 = vmul.f32 %v782, %v781
    %v784 = vmul.f32 0.5, %v783
    %v785 = vsub.f32 1.5, %v784
    %v786 = vmul.f32 %v781, %v785
    %vm787 = vweird.f32 %v780
    %vm788 = vweird.f32 %v781
    %vm789 = vmor %vm787, %vm788
    %v790 = vsel %vm789, %v781, %v786
    %v791 = vmul.f32 %v780, %v790
    %v792 = vmul.f32 %v791, 0.70710677
    %v793 = vtanh.pop %v792
    %v794 = vmin.f32 %v793, 0.996
    %v795 = vmul.f32 %v790, 1.4142135
    %v796 = vmul.f32 %v794, %v795
    %v797 = vmul.f32 %v796, %v437
    %798 = vst [vmem:[#allocation7] sm:$0xff] %v797
    // Predicated region
    $region18: #{tpu_custom_call.1} parent=1 // pred_check
      _
    $region19: #{tpu_custom_call.1} parent=1 // pred_check_branch
      %800 = sbr.rel (0) target = $region21
    $region20: #{tpu_custom_call.1} parent=1 // pred_region
      %802 = vsyncadd [#allocation4], 0
      %s804 = sshll.u32 [#allocation7], 4
      %s805 = int_to_ptr.vmem [resolvable:$true] %s804
      %s806 = sshll.u32 %s2, 4
      %s807 = int_to_ptr.hbm [resolvable:$true] %s806
      %809 = dma.vmem_to_hbm [thread:$0]  %s805, 128, %s807, [#allocation4]
    $region21: #{tpu_custom_call.1} parent=1 // pred_fallthru
      _
    // Predicated region
    $region22: #{tpu_custom_call.1} parent=1 // pred_check
      _
    $region23: #{tpu_custom_call.1} parent=1 // pred_check_branch
      %811 = sbr.rel (0) target = $region25
    $region24: #{tpu_custom_call.1} parent=1 // pred_region
      %813 = dma.done [#allocation4], 128
    $region25: #{tpu_custom_call.1} parent=1 // pred_fallthru
      _
    %814 = vsyncpa [#allocation3], 1
    %815 = vsyncpa [#allocation6], 1
    %816 = vsyncpa [#allocation4], 1

</llo_original>
